<compile_context>
chip_gen: v6e
topology: v6e:2x2x1
jax: 0.10.0
libtpu: 0.0.40
codegen_flags: <defaults>
</compile_context>

<pallas_src>
import jax
import jax.numpy as jnp
from jax import lax
from jax.experimental import pallas as pl
from jax.experimental.pallas import tpu as pltpu

LANES = 128              # lane width (last dim of every tile)
TILE_ELEMS = 8 * LANES   # minimal (8,128)-aligned chunk


def _round_up(x, m):
    return (x + m - 1) // m * m


def _pick_max_block_rows():
    """Generation-aware default tile height (rows of 128 lanes)."""
    kind = ""
    try:
        kind = jax.devices()[0].device_kind.lower()
    except Exception:
        pass
    if "7" in kind:                                   # v7x: 3.2 TB/s HBM
        return 4096
    if "v6" in kind or "v5 lite" in kind or "v5e" in kind or "v5litepod" in kind:
        return 2048
    return 1024                                       # conservative fallback


def _pow_static(w, gamma):
    """(1 - pt) ** gamma with a static gamma; square-and-multiply for ints."""
    g = float(gamma)
    if g == 0.0:
        return jnp.ones_like(w)
    if g == 1.0:
        return w
    if g == 2.0:
        return w * w
    if g == int(g) and 0 < int(g) <= 16:
        e = int(g)
        result, base = None, w
        while e:
            if e & 1:
                result = base if result is None else result * base
            e >>= 1
            if e:
                base = base * base
        return result
    # Generic exponent: clamp base so tiny negative rounding never yields NaN.
    return jnp.power(jnp.maximum(w, 0.0), jnp.float32(g))


def _make_kernel(alpha, gamma, n, block_rows, p_split, s_steps, nb):
    """Partial-sum kernel; alpha/gamma/n/grid geometry are all static."""
    block_elems = block_rows * LANES
    needs_mask = (n % block_elems) != 0          # static: one straddling block
    rem = n - (nb - 1) * block_elems             # static valid count in last block

    def kernel(x_ref, t_ref, out_ref):
        s = pl.program_id(1)                     # reduction axis

        @pl.when(s == 0)
        def _():
            out_ref[...] = jnp.zeros_like(out_ref)

        x = x_ref[...].astype(jnp.float32)
        t = t_ref[...].astype(jnp.float32)

        # Numerically-stable BCEWithLogits (matches torch):
        #   max(x, 0) - x*t + log(1 + exp(-|x|))
        bce = jnp.maximum(x, 0.0) - x * t + jnp.log1p(jnp.exp(-jnp.abs(x)))
        pt = jnp.exp(-bce)
        fl = alpha * _pow_static(1.0 - pt, gamma) * bce

        def accumulate(v):
            # (block_rows,128) -> (8,128): pure vreg-wise VPU adds; the single
            # cross-lane reduce is deferred to JAX after the kernel.
            partial = v.reshape(block_rows // 8, 8, LANES).sum(axis=0)
            out_ref[...] += partial.reshape(1, 8, LANES)

        if not needs_mask:
            accumulate(fl)                       # mask-free fast path, all blocks
        else:
            p = pl.program_id(0)
            is_last = (p == p_split - 1) & (s == s_steps - 1)

            @pl.when(jnp.logical_not(is_last))
            def _():
                accumulate(fl)                   # full blocks: no mask work

            @pl.when(is_last)
            def _():
                # Only this single straddling block pays for the mask; it also
                # covers the (8,128)-pad tail and any partial-edge-block garbage.
                row = lax.broadcasted_iota(jnp.int32, (block_rows, LANES), 0)
                lane = lax.broadcasted_iota(jnp.int32, (block_rows, LANES), 1)
                local = row * LANES + lane       # block-local index, no overflow
                accumulate(jnp.where(local < rem, fl, 0.0))

    return kernel


def focal_loss(inputs, targets, alpha=0.75, gamma=2.0, max_block_rows=None):
    """Pallas implementation of FocalLoss.forward (scalar mean output)."""
    assert inputs.shape == targets.shape
    n = int(inputs.size)
    if n == 0:
        return jnp.float32(jnp.nan)              # torch: mean of empty -> nan
    assert n < 2 ** 31, "focal_loss: element count must fit in int32"

    x = inputs.reshape(-1)
    t = targets.reshape(-1)

    # Pad only when n is not already a multiple of one (8,128) tile; the
    # padded elements are killed by the straddling-block mask in-kernel.
    n_pad = _round_up(n, TILE_ELEMS)
    if n_pad != n:
        x = jnp.pad(x, (0, n_pad - n))
        t = jnp.pad(t, (0, n_pad - n))
    rows = n_pad // LANES                        # multiple of 8 by construction

    if max_block_rows is None:
        max_block_rows = _pick_max_block_rows()
    max_block_rows = max(8, (int(max_block_rows) // 8) * 8)
    block_rows = min(max_block_rows, rows)

    x2 = x.reshape(rows, LANES)
    t2 = t.reshape(rows, LANES)

    nb = (rows + block_rows - 1) // block_rows   # number of logical row-blocks
    # 2-way split of the reduction axis (megacore sharding on multi-TC chips)
    # only when it is free: nb even => no clamped / duplicated tiles ever.
    if nb >= 2 and nb % 2 == 0:
        p_split, s_steps = 2, nb // 2
    else:
        p_split, s_steps = 1, nb

    kernel = _make_kernel(float(alpha), float(gamma), n, block_rows,
                          p_split, s_steps, nb)

    in_spec = pl.BlockSpec((block_rows, LANES), lambda p, s: (p * s_steps + s, 0))

    compiler_kwargs = dict(dimension_semantics=("parallel", "arbitrary"))
    if block_rows >= 4096:
        compiler_kwargs["vmem_limit_bytes"] = 48 * 1024 * 1024
    elif block_rows >= 2048:
        # Raise v5e's 16 MiB scoped-VMEM default; within physical VMEM everywhere.
        compiler_kwargs["vmem_limit_bytes"] = 32 * 1024 * 1024

    partials = pl.pallas_call(
        kernel,
        out_shape=jax.ShapeDtypeStruct((p_split, 8, LANES), jnp.float32),
        grid_spec=pltpu.PrefetchScalarGridSpec(
            num_scalar_prefetch=0,
            grid=(p_split, s_steps),
            in_specs=[in_spec, in_spec],
            out_specs=pl.BlockSpec((1, 8, LANES), lambda p, s: (p, 0, 0)),
        ),
        compiler_params=pltpu.CompilerParams(**compiler_kwargs),
    )(x2, t2)

    # Tiny cross-lane reduce + mean in JAX.
    # TODO(synk): could fold this (8,128)->scalar reduce into the last grid step.
    return jnp.sum(partials) / jnp.float32(n)


def _reference(inputs, targets, alpha=0.75, gamma=2.0):
    x = inputs.astype(jnp.float32)
    t = targets.astype(jnp.float32)
    bce = jnp.maximum(x, 0.0) - x * t + jnp.log1p(jnp.exp(-jnp.abs(x)))
    pt = jnp.exp(-bce)
    return jnp.mean(alpha * (1.0 - pt) ** gamma * bce)


if __name__ == "__main__":
    key = jax.random.PRNGKey(0)
    ks = jax.random.split(key, 8)

    # Test 1: NCHW logits/targets (B=2, C=4, H=16, W=16), default alpha/gamma.
    inputs = jax.random.normal(ks[0], (2, 4, 16, 16), dtype=jnp.float32)
    targets = (jax.random.uniform(ks[1], (2, 4, 16, 16)) > 0.5).astype(jnp.float32)
    out = jax.block_until_ready(focal_loss(inputs, targets))
    ref = _reference(inputs, targets)
    assert jnp.allclose(out, ref, atol=1e-5, rtol=1e-5), (out, ref)

    # Test 2: ragged size (n % 1024 != 0) -> single masked straddling block.
    inputs2 = jax.random.normal(ks[2], (2, 3, 10, 10), dtype=jnp.float32)
    targets2 = (jax.random.uniform(ks[3], (2, 3, 10, 10)) > 0.5).astype(jnp.float32)
    out2 = jax.block_until_ready(focal_loss(inputs2, targets2, alpha=0.5, gamma=2.0))
    ref2 = _reference(inputs2, targets2, alpha=0.5, gamma=2.0)
    assert jnp.allclose(out2, ref2, atol=1e-5, rtol=1e-5), (out2, ref2)

    # Test 3: several full blocks with an odd block count (p_split forced to 1),
    # small-integer gamma (square-and-multiply), native-bf16 binary targets.
    inputs3 = jax.random.normal(ks[4], (2, 4, 16, 24), dtype=jnp.float32)
    targets3 = (jax.random.uniform(ks[5], (2, 4, 16, 24)) > 0.5).astype(jnp.bfloat16)
    out3 = jax.block_until_ready(focal_loss(inputs3, targets3, gamma=3,
                                            max_block_rows=8))
    ref3 = _reference(inputs3, targets3.astype(jnp.float32), gamma=3)
    assert jnp.allclose(out3, ref3, atol=1e-5, rtol=1e-5), (out3, ref3)

    # Test 4: ragged size with an even block count -> exercises the 2-way
    # "parallel" split together with the masked last block.
    inputs4 = jax.random.normal(ks[6], (2, 3, 10, 25), dtype=jnp.float32)
    targets4 = (jax.random.uniform(ks[7], (2, 3, 10, 25)) > 0.5).astype(jnp.float32)
    out4 = jax.block_until_ready(focal_loss(inputs4, targets4, max_block_rows=8))
    ref4 = _reference(inputs4, targets4)
    assert jnp.allclose(out4, ref4, atol=1e-5, rtol=1e-5), (out4, ref4)

    print("KERNEL_OK")
</pallas_src>

<mosaic_0001>
module attributes {stable_mosaic.version = 11 : i64} {
  func.func @kernel(%arg0: i32, %arg1: i32, %arg2: memref<16x128xf32, #tpu.memory_space<vmem>>, %arg3: memref<16x128xf32, #tpu.memory_space<vmem>>, %arg4: memref<1x8x128xf32, #tpu.memory_space<vmem>>) attributes {dimension_semantics = [#tpu.dimension_semantics<parallel>, #tpu.dimension_semantics<arbitrary>], iteration_bounds = array<i64: 1, 1>, scalar_prefetch = 0 : i64, scratch_operands = 0 : i64, tpu.core_type = #tpu.core_type<tc>, window_params = [{transform_indices = @transform_0, window_bounds = array<i64: 16, 128>}, {transform_indices = @transform_1, window_bounds = array<i64: 16, 128>}, {transform_indices = @transform_2, window_bounds = array<i64: 1, 8, 128>}]} {
    %c0_i32 = arith.constant 0 : i32
    %0 = arith.cmpi eq, %arg1, %c0_i32 : i32
    %1 = arith.extui %0 : i1 to i32
    %c0_i32_0 = arith.constant 0 : i32
    %2 = arith.cmpi ne, %1, %c0_i32_0 : i32
    scf.if %2 {
      %cst_15 = arith.constant 0.000000e+00 : f32
      %30 = vector.broadcast %cst_15 : f32 to vector<1x8x128xf32>
      %c0_16 = arith.constant 0 : index
      %c0_17 = arith.constant 0 : index
      %c0_18 = arith.constant 0 : index
      %31 = vector.load %arg4[%c0_16, %c0_17, %c0_18] : memref<1x8x128xf32, #tpu.memory_space<vmem>>, vector<1x8x128xf32>
      tpu.vector_store %arg4[%c0_16, %c0_17, %c0_18], %30 {strides = array<i32>} : memref<1x8x128xf32, #tpu.memory_space<vmem>>, vector<1x8x128xf32>,
    } else {
    }
    %c0 = arith.constant 0 : index
    %c0_1 = arith.constant 0 : index
    %3 = vector.load %arg2[%c0, %c0_1] : memref<16x128xf32, #tpu.memory_space<vmem>>, vector<16x128xf32>
    %c0_2 = arith.constant 0 : index
    %c0_3 = arith.constant 0 : index
    %4 = vector.load %arg3[%c0_2, %c0_3] : memref<16x128xf32, #tpu.memory_space<vmem>>, vector<16x128xf32>
    %cst = arith.constant 0.000000e+00 : f32
    %5 = vector.broadcast %cst : f32 to vector<16x128xf32>
    %6 = arith.maximumf %3, %5 : vector<16x128xf32>
    %7 = arith.mulf %3, %4 : vector<16x128xf32>
    %8 = arith.subf %6, %7 : vector<16x128xf32>
    %9 = math.absf %3 : vector<16x128xf32>
    %cst_4 = arith.constant 0.000000e+00 : f32
    %10 = vector.broadcast %cst_4 : f32 to vector<16x128xf32>
    %11 = arith.subf %10, %9 : vector<16x128xf32>
    %12 = math.exp %11 : vector<16x128xf32>
    %13 = math.log1p %12 : vector<16x128xf32>
    %14 = arith.addf %8, %13 : vector<16x128xf32>
    %cst_5 = arith.constant 0.000000e+00 : f32
    %15 = vector.broadcast %cst_5 : f32 to vector<16x128xf32>
    %16 = arith.subf %15, %14 : vector<16x128xf32>
    %17 = math.exp %16 : vector<16x128xf32>
    %cst_6 = arith.constant 1.000000e+00 : f32
    %18 = vector.broadcast %cst_6 : f32 to vector<16x128xf32>
    %19 = arith.subf %18, %17 : vector<16x128xf32>
    %20 = arith.mulf %19, %19 : vector<16x128xf32>
    %cst_7 = arith.constant 7.500000e-01 : f32
    %21 = vector.broadcast %cst_7 : f32 to vector<16x128xf32>
    %22 = arith.mulf %21, %20 : vector<16x128xf32>
    %23 = arith.mulf %22, %14 : vector<16x128xf32>
    %24 = vector.shape_cast %23 : vector<16x128xf32> to vector<2x8x128xf32>
    %cst_8 = arith.constant dense<0.000000e+00> : vector<8x128xf32>
    %25 = vector.multi_reduction <add>, %24, %cst_8 [0] : vector<2x8x128xf32> to vector<8x128xf32>
    %c0_9 = arith.constant 0 : index
    %c0_10 = arith.constant 0 : index
    %c0_11 = arith.constant 0 : index
    %26 = vector.load %arg4[%c0_9, %c0_10, %c0_11] : memref<1x8x128xf32, #tpu.memory_space<vmem>>, vector<1x8x128xf32>
    %27 = vector.shape_cast %25 : vector<8x128xf32> to vector<1x8x128xf32>
    %28 = arith.addf %26, %27 : vector<1x8x128xf32>
    %c0_12 = arith.constant 0 : index
    %c0_13 = arith.constant 0 : index
    %c0_14 = arith.constant 0 : index
    %29 = vector.load %arg4[%c0_12, %c0_13, %c0_14] : memref<1x8x128xf32, #tpu.memory_space<vmem>>, vector<1x8x128xf32>
    tpu.vector_store %arg4[%c0_12, %c0_13, %c0_14], %28 {strides = array<i32>} : memref<1x8x128xf32, #tpu.memory_space<vmem>>, vector<1x8x128xf32>,
    return
  }
  func.func @transform_0(%arg0: i32, %arg1: i32) -> (i32, i32) {
    %c1_i32 = arith.constant 1 : i32
    %0 = arith.muli %arg0, %c1_i32 : i32
    %1 = arith.addi %0, %arg1 : i32
    %c0_i32 = arith.constant 0 : i32
    %c0_i32_0 = arith.constant 0 : i32
    return %1, %c0_i32 : i32, i32
  }
  func.func @transform_1(%arg0: i32, %arg1: i32) -> (i32, i32) {
    %c1_i32 = arith.constant 1 : i32
    %0 = arith.muli %arg0, %c1_i32 : i32
    %1 = arith.addi %0, %arg1 : i32
    %c0_i32 = arith.constant 0 : i32
    %c0_i32_0 = arith.constant 0 : i32
    return %1, %c0_i32 : i32, i32
  }
  func.func @transform_2(%arg0: i32, %arg1: i32) -> (i32, i32, i32) {
    %c0_i32 = arith.constant 0 : i32
    %c0_i32_0 = arith.constant 0 : i32
    %c0_i32_1 = arith.constant 0 : i32
    return %arg0, %c0_i32, %c0_i32_0 : i32, i32, i32
  }
}

</mosaic_0001>

<llo_original>
// kernel: tpu_custom_call.1
$region0: #{tpu_custom_call.1}
  #allocation0 [shape = 'u32[]', space=smem, size = 0x4, offset = 0x4, fixed_abs, tag = 'smem constant byte address 0x4 - core index']
  #allocation1 [shape = 'u32[144,128]{1,0:T(1,128)}', space=vmem, size = 0x12000, scoped, tag = 'internal scratch']
  %s0 = inlined_call_operand.hbm [shape: f32[16,128], index: 0, kind: input, shape index: {}]
  %s1 = inlined_call_operand.hbm [shape: f32[16,128], index: 1, kind: input, shape index: {}]
  %s2 = inlined_call_operand.hbm [shape: f32[1,8,128], index: 2, kind: output, shape index: {}]
  %s3 = sld [smem:[#allocation0]]
  $region30: #{tpu_custom_call.1} parent=0
    _
  %s5 = ssub.s32 1, %s3
  %s6 = scalar_select 0, %s5, %s3
  $region1: #{tpu_custom_call.1} parent=0
    #allocation2 [shape = 'u8[8192]{0}', space=vmem, size = 0x2000, scoped, tag = 'input window, operand 0, single buffered']
    #allocation3 [shape = 's32[1]{0}', space=sflag, size = 0x4, scoped, tag = 'scoped memory for tpu_custom_call.1']
    #allocation4 [shape = 's32[1]{0}', space=sflag, size = 0x4, scoped, tag = 'scoped memory for tpu_custom_call.1']
    #allocation5 [shape = 'u8[8192]{0}', space=vmem, size = 0x2000, scoped, tag = 'input window, operand 1, single buffered']
    #allocation6 [shape = 's32[1]{0}', space=sflag, size = 0x4, scoped, tag = 'scoped memory for tpu_custom_call.1']
    #allocation7 [shape = 'u8[4096]{0}', space=vmem, size = 0x1000, scoped, tag = 'output window, operand 0, single buffered']
    %7 = vsyncpa [#allocation3], 0
    %8 = vsyncpa [#allocation6], 0
    %9 = vsyncpa [#allocation4], 0
    // Predicated region
    $region2: #{tpu_custom_call.1} parent=1 // pred_check
      _
    $region3: #{tpu_custom_call.1} parent=1 // pred_check_branch
      %11 = sbr.rel (0) target = $region5
    $region4: #{tpu_custom_call.1} parent=1 // pred_region
      %s12 = sadd.s32 0, 0
      %s13 = smul.u32 2, %s12
      %s15 = ssub.s32 256, 256
      %16 = vsyncadd [#allocation3], %s15
      %s17 = smul.addr %s13, 128
      %s18 = scalar_lea.hbm %s0, %s17
      %s19 = sshll.u32 [#allocation2], 4
      %s20 = int_to_ptr.vmem [resolvable:$true] %s19
      %25 = dma.hbm_to_vmem [thread:$0]  %s18, 256, %s20, [#allocation3], 128, 128, 8
    $region5: #{tpu_custom_call.1} parent=1 // pred_fallthru
      _
    // Predicated region
    $region6: #{tpu_custom_call.1} parent=1 // pred_check
      _
    $region7: #{tpu_custom_call.1} parent=1 // pred_check_branch
      %27 = sbr.rel (0) target = $region9
    $region8: #{tpu_custom_call.1} parent=1 // pred_region
      %s28 = sadd.s32 0, 0
      %s29 = smul.u32 2, %s28
      %s31 = ssub.s32 256, 256
      %32 = vsyncadd [#allocation6], %s31
      %s33 = smul.addr %s29, 128
      %s34 = scalar_lea.hbm %s1, %s33
      %s35 = sshll.u32 [#allocation5], 4
      %s36 = int_to_ptr.vmem [resolvable:$true] %s35
      %41 = dma.hbm_to_vmem [thread:$0]  %s34, 256, %s36, [#allocation6], 128, 128, 8
    $region9: #{tpu_custom_call.1} parent=1 // pred_fallthru
      _
    // Predicated region
    $region10: #{tpu_custom_call.1} parent=1 // pred_check
      _
    $region11: #{tpu_custom_call.1} parent=1 // pred_check_branch
      %43 = sbr.rel (0) target = $region13
    $region12: #{tpu_custom_call.1} parent=1 // pred_region
      %44 = dma.done [#allocation3], 256
    $region13: #{tpu_custom_call.1} parent=1 // pred_fallthru
      _
    // Predicated region
    $region14: #{tpu_custom_call.1} parent=1 // pred_check
      _
    $region15: #{tpu_custom_call.1} parent=1 // pred_check_branch
      %46 = sbr.rel (0) target = $region17
    $region16: #{tpu_custom_call.1} parent=1 // pred_region
      %47 = dma.done [#allocation6], 256
    $region17: #{tpu_custom_call.1} parent=1 // pred_fallthru
      _
    %s48 = sadd.s32 0, 0
    %s49 = smul.u32 2, %s48
    %s50 = sadd.s32 0, 0
    %s51 = smul.u32 2, %s50
    %p52 = scmp.eq.s32.totalorder 0, 0
    // Predicated region
    $region18: #{tpu_custom_call.1} parent=1 // pred_check
      %p53 = pneg %p52
    $region19: #{tpu_custom_call.1} parent=1 // pred_check_branch
      %55 = sbr.rel (%p53) target = $region21
    $region20: #{tpu_custom_call.1} parent=1 // pred_region
      %56 = vst [vmem:[#allocation7] sm:$0xff] 0.0
    $region21: #{tpu_custom_call.1} parent=1 // pred_fallthru
      _
    %v57 = vld [vmem:[#allocation2] sm:$0xff]
    %v58 = vld [vmem:[#allocation2 + $0x8] sm:$0xff]
    %v59 = vld [vmem:[#allocation5] sm:$0xff]
    %v60 = vld [vmem:[#allocation5 + $0x8] sm:$0xff]
    %v61 = vmax.f32 %v57, 0.0
    %v62 = vmax.f32 %v58, 0.0
    %v63 = vmul.f32 %v57, %v59
    %v64 = vmul.f32 %v58, %v60
    %v65 = vsub.f32 %v61, %v63
    %v66 = vsub.f32 %v62, %v64
    %v67 = vand.u32 2147483647, %v57
    %v68 = vand.u32 2147483647, %v58
    %v69 = vsub.f32 0.0, %v67
    %v70 = vsub.f32 0.0, %v68
    %v71 = vmul.f32 %v69, 1.442695
    %v72 = vpow.pop %v71
    %v73 = vmul.f32 %v70, 1.442695
    %v74 = vpow.pop %v73
    %v75 = vadd.f32 %v72, 1.0
    %v76 = vlog2.pop %v75
    %v77 = vmul.f32 %v76, 0.6931472
    %v78 = vmul.f32 -0.5, %v72
    %v79 = vadd.f32 %v78, 1.0
    %v80 = vmul.f32 %v79, %v72
    %v81 = vand.u32 2147483647, %v72
    %vm82 = vcmp.lt.f32.partialorder %v81, 0.0004427343
    %v83 = vsel %vm82, %v80, %v77
    %v84 = vadd.f32 %v74, 1.0
    %v85 = vlog2.pop %v84
    %v86 = vmul.f32 %v85, 0.6931472
    %v87 = vmul.f32 -0.5, %v74
    %v88 = vadd.f32 %v87, 1.0
    %v89 = vmul.f32 %v88, %v74
    %v90 = vand.u32 2147483647, %v74
    %vm91 = vcmp.lt.f32.partialorder %v90, 0.0004427343
    %v92 = vsel %vm91, %v89, %v86
    %v93 = vadd.f32 %v65, %v83
    %v94 = vadd.f32 %v66, %v92
    %v95 = vsub.f32 0.0, %v93
    %v96 = vsub.f32 0.0, %v94
    %v97 = vmul.f32 %v95, 1.442695
    %v98 = vpow.pop %v97
    %v99 = vmul.f32 %v96, 1.442695
    %v100 = vpow.pop %v99
    %v101 = vsub.f32 1.0, %v98
    %v102 = vsub.f32 1.0, %v100
    %v103 = vmul.f32 %v101, %v101
    %v104 = vmul.f32 %v102, %v102
    %v105 = vmul.f32 %v103, 0.75
    %v106 = vmul.f32 %v104, 0.75
    %v107 = vmul.f32 %v105, %v93
    %v108 = vmul.f32 %v106, %v94
    %v109 = vadd.f32 %v107, %v108
    %v110 = vld [vmem:[#allocation7] sm:$0xff]
    %v111 = vadd.f32 %v110, %v109
    %112 = vst [vmem:[#allocation7] sm:$0xff] %v111
    // Predicated region
    $region22: #{tpu_custom_call.1} parent=1 // pred_check
      _
    $region23: #{tpu_custom_call.1} parent=1 // pred_check_branch
      %114 = sbr.rel (0) target = $region25
    $region24: #{tpu_custom_call.1} parent=1 // pred_region
      %s116 = ssub.s32 128, 128
      %117 = vsyncadd [#allocation4], %s116
      %s119 = sshll.u32 [#allocation7], 4
      %s120 = int_to_ptr.vmem [resolvable:$true] %s119
      %122 = dma.vmem_to_hbm [thread:$0]  %s120, 128, %s2, [#allocation4]
    $region25: #{tpu_custom_call.1} parent=1 // pred_fallthru
      _
    // Predicated region
    $region26: #{tpu_custom_call.1} parent=1 // pred_check
      _
    $region27: #{tpu_custom_call.1} parent=1 // pred_check_branch
      %124 = sbr.rel (0) target = $region29
    $region28: #{tpu_custom_call.1} parent=1 // pred_region
      %125 = dma.done [#allocation4], 128
    $region29: #{tpu_custom_call.1} parent=1 // pred_fallthru
      _
    %126 = vsyncpa [#allocation3], 1
    %127 = vsyncpa [#allocation6], 1
    %128 = vsyncpa [#allocation4], 1

</llo_original>
